<compile_context>
chip_gen: v7x
topology: tpu7x:2x2x1
jax: 0.10.0
libtpu: 0.0.40
codegen_flags: <defaults>
</compile_context>

<pallas_src>
import jax
import jax.numpy as jnp
from jax.experimental import pallas as pl
from jax.experimental.pallas import tpu as pltpu

INPUT_DIM = 1 + 16      # 17, as in the PyTorch module
K_PAD = 32              # input features padded (zero columns) for aligned loads
HIDDEN = 128
OUTPUT_DIM = 3
OUT_PAD = 8             # transposed-output rows: 3 real + 5 zero (sublane-aligned)
MAX_TILE_B = 4096       # max batch rows per grid step


def dqn_kernel(x_ref, w1_ref, b1_ref, w2_ref, b2_ref, w3t_ref, b3t_ref, o_ref):
    # x tile: (TILE_B, 32) bf16; weights bf16; biases f32.
    x = x_ref[...]
    h1 = jnp.dot(x, w1_ref[...], preferred_element_type=jnp.float32) + b1_ref[...]
    h1 = jnp.maximum(h1, 0.0)                                        # (TILE_B, 128) f32
    h2 = jnp.dot(h1.astype(jnp.bfloat16), w2_ref[...],
                 preferred_element_type=jnp.float32) + b2_ref[...]
    h2 = jnp.maximum(h2, 0.0)                                        # (TILE_B, 128) f32
    # Final layer transposed on the MXU: (8,128) . (TILE_B,128)^T -> (8, TILE_B).
    # Lane dim = TILE_B stays dense (unmasked vst); only rows 0..2 are real.
    out_t = jax.lax.dot_general(
        w3t_ref[...], h2.astype(jnp.bfloat16),
        dimension_numbers=(((1,), (1,)), ((), ())),
        preferred_element_type=jnp.float32) + b3t_ref[...]           # (8, TILE_B) f32
    o_ref[...] = out_t.astype(jnp.bfloat16)                          # bf16 writeback


def init_params(key):
    """PyTorch nn.Linear default init: U(-1/sqrt(fan_in), 1/sqrt(fan_in)).
    Weights stored as (in_features, out_features) so forward is x @ W + b."""
    def linear(key, fan_in, fan_out):
        kw, kb = jax.random.split(key)
        bound = 1.0 / jnp.sqrt(float(fan_in))
        w = jax.random.uniform(kw, (fan_in, fan_out), jnp.float32, -bound, bound)
        b = jax.random.uniform(kb, (1, fan_out), jnp.float32, -bound, bound)
        return w, b

    k1, k2, k3 = jax.random.split(key, 3)
    w1, b1 = linear(k1, INPUT_DIM, HIDDEN)
    w2, b2 = linear(k2, HIDDEN, HIDDEN)
    w3, b3 = linear(k3, HIDDEN, OUTPUT_DIM)
    return (w1, b1, w2, b2, w3, b3)


def prepare_params(params):
    """One-time prep: pad to lane/sublane-aligned shapes, transpose W3, cast
    matmul operands to bf16 (biases stay f32)."""
    w1, b1, w2, b2, w3, b3 = params
    w1p = jnp.zeros((K_PAD, HIDDEN), jnp.float32).at[:INPUT_DIM, :].set(w1)
    w3t = jnp.zeros((OUT_PAD, HIDDEN), jnp.float32).at[:OUTPUT_DIM, :].set(w3.T)
    b3t = jnp.zeros((OUT_PAD, 1), jnp.float32).at[:OUTPUT_DIM, 0].set(b3[0])
    return (
        w1p.astype(jnp.bfloat16), b1.astype(jnp.float32),
        w2.astype(jnp.bfloat16),  b2.astype(jnp.float32),
        w3t.astype(jnp.bfloat16), b3t.astype(jnp.float32),
    )


def _round_up(n, m):
    return ((n + m - 1) // m) * m


def _choose_tile(batch):
    """Pick (tile_b, num_tiles).  Small batches -> one tile covering the whole
    (slightly padded) batch; larger batches -> >=2 steps (v7x has 2 TCs), tile
    capped at MAX_TILE_B and kept a multiple of 128 so the (8, tile_b)
    transposed output block stays lane-dense across blocks."""
    b16 = _round_up(batch, 16)          # bf16 sublane packing
    if b16 <= 256:
        return b16, 1
    n = max(2, pl.cdiv(b16, MAX_TILE_B))
    tile_b = _round_up(pl.cdiv(b16, n), 128)
    return tile_b, pl.cdiv(b16, tile_b)


@jax.jit
def dqn_forward(x, prepared_params):
    """x: (B, 17) float32. Returns (B, 3) float32 Q-values."""
    w1, b1, w2, b2, w3t, b3t = prepared_params
    B = x.shape[0]
    tile_b, num_tiles = _choose_tile(B)
    b_pad = num_tiles * tile_b

    # Pad batch rows (zeros, inert) and 17 -> 32 feature columns; cast to bf16.
    x_p = jnp.zeros((b_pad, K_PAD), jnp.bfloat16)
    x_p = x_p.at[:B, :INPUT_DIM].set(x.astype(jnp.bfloat16))

    const = lambda i: (0, 0)   # weights/biases resident across grid steps

    flops = 2 * b_pad * (K_PAD * HIDDEN + HIDDEN * HIDDEN + HIDDEN * OUT_PAD)
    bytes_accessed = (
        b_pad * K_PAD * 2                                   # x (bf16)
        + (K_PAD * HIDDEN + HIDDEN * HIDDEN + OUT_PAD * HIDDEN) * 2  # weights
        + (2 * HIDDEN + OUT_PAD) * 4                        # biases (f32)
        + OUT_PAD * b_pad * 2                               # output (bf16)
    )

    out_t = pl.pallas_call(
        dqn_kernel,
        out_shape=jax.ShapeDtypeStruct((OUT_PAD, b_pad), jnp.bfloat16),
        grid=(num_tiles,),
        in_specs=[
            pl.BlockSpec((tile_b, K_PAD), lambda i: (i, 0)),   # x tile
            pl.BlockSpec((K_PAD, HIDDEN), const),              # w1 (padded rows)
            pl.BlockSpec((1, HIDDEN), const),                  # b1
            pl.BlockSpec((HIDDEN, HIDDEN), const),              # w2
            pl.BlockSpec((1, HIDDEN), const),                  # b2
            pl.BlockSpec((OUT_PAD, HIDDEN), const),             # W3^T (padded rows)
            pl.BlockSpec((OUT_PAD, 1), const),                  # b3^T (padded rows)
        ],
        out_specs=pl.BlockSpec((OUT_PAD, tile_b), lambda i: (0, i)),
        compiler_params=pltpu.CompilerParams(
            dimension_semantics=("parallel",),                  # v7x: shard batch over 2 TCs
        ),
        cost_estimate=pl.CostEstimate(
            flops=flops, transcendentals=0, bytes_accessed=bytes_accessed),
    )(x_p, w1, b1, w2, b2, w3t, b3t)

    # (8, b_pad) bf16 -> (B, 3) f32
    return out_t[:OUTPUT_DIM, :B].T.astype(jnp.float32)


def dqn_reference(x, params):
    """Pure-JAX f32 reference matching the PyTorch forward."""
    w1, b1, w2, b2, w3, b3 = params
    h1 = jnp.maximum(x @ w1 + b1, 0.0)
    h2 = jnp.maximum(h1 @ w2 + b2, 0.0)
    return h2 @ w3 + b3


if __name__ == "__main__":
    key = jax.random.PRNGKey(0)
    kx, kp = jax.random.split(key)

    B = 8
    x = jax.random.normal(kx, (B, INPUT_DIM), jnp.float32)
    params = init_params(kp)
    prepared = prepare_params(params)

    out = dqn_forward(x, prepared)
    out = jax.block_until_ready(out)

    ref = dqn_reference(x, params)
    assert out.shape == (B, OUTPUT_DIM), out.shape
    # bf16 matmul operands + bf16 output store => loosened tolerance vs f32 ref.
    assert jnp.allclose(out, ref, atol=4e-2, rtol=4e-2), (
        "mismatch vs reference, max abs err = "
        f"{float(jnp.max(jnp.abs(out - ref)))}"
    )

    print("KERNEL_OK")
</pallas_src>

<mosaic_0001>
module attributes {stable_mosaic.version = 11 : i64} {
  func.func @dqn_kernel(%arg0: i32, %arg1: memref<16x32xbf16, #tpu.memory_space<vmem>>, %arg2: memref<32x128xbf16, #tpu.memory_space<vmem>>, %arg3: memref<1x128xf32, #tpu.memory_space<vmem>>, %arg4: memref<128x128xbf16, #tpu.memory_space<vmem>>, %arg5: memref<1x128xf32, #tpu.memory_space<vmem>>, %arg6: memref<8x128xbf16, #tpu.memory_space<vmem>>, %arg7: memref<8x1xf32, #tpu.memory_space<vmem>>, %arg8: memref<8x16xbf16, #tpu.memory_space<vmem>>) attributes {dimension_semantics = [#tpu.dimension_semantics<parallel>], iteration_bounds = array<i64: 1>, scalar_prefetch = 0 : i64, scratch_operands = 0 : i64, tpu.core_type = #tpu.core_type<tc>, window_params = [{transform_indices = @transform_0, window_bounds = array<i64: 16, 32>}, {pipeline_mode = #tpu.pipeline_mode<synchronous>, transform_indices = @transform_1, window_bounds = array<i64: 32, 128>}, {pipeline_mode = #tpu.pipeline_mode<synchronous>, transform_indices = @transform_2, window_bounds = array<i64: 1, 128>}, {pipeline_mode = #tpu.pipeline_mode<synchronous>, transform_indices = @transform_3, window_bounds = array<i64: 128, 128>}, {pipeline_mode = #tpu.pipeline_mode<synchronous>, transform_indices = @transform_4, window_bounds = array<i64: 1, 128>}, {pipeline_mode = #tpu.pipeline_mode<synchronous>, transform_indices = @transform_5, window_bounds = array<i64: 8, 128>}, {pipeline_mode = #tpu.pipeline_mode<synchronous>, transform_indices = @transform_6, window_bounds = array<i64: 8, 1>}, {transform_indices = @transform_7, window_bounds = array<i64: 8, 16>}]} {
    %c0 = arith.constant 0 : index
    %c0_0 = arith.constant 0 : index
    %0 = vector.load %arg1[%c0, %c0_0] : memref<16x32xbf16, #tpu.memory_space<vmem>>, vector<16x32xbf16>
    %c0_1 = arith.constant 0 : index
    %c0_2 = arith.constant 0 : index
    %1 = vector.load %arg2[%c0_1, %c0_2] : memref<32x128xbf16, #tpu.memory_space<vmem>>, vector<32x128xbf16>
    %cst = arith.constant dense<0.000000e+00> : vector<16x128xf32>
    %2 = tpu.matmul %0, %1, %cst {dimension_numbers = #tpu.dot_dimension_numbers<[1], [0], [0], [1], [0, 0, 1, 1], [], []>} : vector<16x32xbf16>, vector<32x128xbf16>, vector<16x128xf32> -> vector<16x128xf32>
    %c0_3 = arith.constant 0 : index
    %c0_4 = arith.constant 0 : index
    %3 = vector.load %arg3[%c0_3, %c0_4] : memref<1x128xf32, #tpu.memory_space<vmem>>, vector<1x128xf32>
    %4 = vector.broadcast %3 : vector<1x128xf32> to vector<16x128xf32>
    %5 = arith.addf %2, %4 : vector<16x128xf32>
    %cst_5 = arith.constant 0.000000e+00 : f32
    %6 = vector.broadcast %cst_5 : f32 to vector<16x128xf32>
    %7 = arith.maximumf %5, %6 : vector<16x128xf32>
    %8 = arith.truncf %7 : vector<16x128xf32> to vector<16x128xbf16>
    %c0_6 = arith.constant 0 : index
    %c0_7 = arith.constant 0 : index
    %9 = vector.load %arg4[%c0_6, %c0_7] : memref<128x128xbf16, #tpu.memory_space<vmem>>, vector<128x128xbf16>
    %cst_8 = arith.constant dense<0.000000e+00> : vector<16x128xf32>
    %10 = tpu.matmul %8, %9, %cst_8 {dimension_numbers = #tpu.dot_dimension_numbers<[1], [0], [0], [1], [0, 0, 1, 1], [], []>} : vector<16x128xbf16>, vector<128x128xbf16>, vector<16x128xf32> -> vector<16x128xf32>
    %c0_9 = arith.constant 0 : index
    %c0_10 = arith.constant 0 : index
    %11 = vector.load %arg5[%c0_9, %c0_10] : memref<1x128xf32, #tpu.memory_space<vmem>>, vector<1x128xf32>
    %12 = vector.broadcast %11 : vector<1x128xf32> to vector<16x128xf32>
    %13 = arith.addf %10, %12 : vector<16x128xf32>
    %cst_11 = arith.constant 0.000000e+00 : f32
    %14 = vector.broadcast %cst_11 : f32 to vector<16x128xf32>
    %15 = arith.maximumf %13, %14 : vector<16x128xf32>
    %c0_12 = arith.constant 0 : index
    %c0_13 = arith.constant 0 : index
    %16 = vector.load %arg6[%c0_12, %c0_13] : memref<8x128xbf16, #tpu.memory_space<vmem>>, vector<8x128xbf16>
    %17 = arith.truncf %15 : vector<16x128xf32> to vector<16x128xbf16>
    %cst_14 = arith.constant dense<0.000000e+00> : vector<8x16xf32>
    %18 = tpu.matmul %16, %17, %cst_14 {dimension_numbers = #tpu.dot_dimension_numbers<[1], [1], [0], [0], [0, 0, 1, 0], [], []>} : vector<8x128xbf16>, vector<16x128xbf16>, vector<8x16xf32> -> vector<8x16xf32>
    %c0_15 = arith.constant 0 : index
    %c0_16 = arith.constant 0 : index
    %19 = vector.load %arg7[%c0_15, %c0_16] : memref<8x1xf32, #tpu.memory_space<vmem>>, vector<8x1xf32>
    %20 = vector.broadcast %19 : vector<8x1xf32> to vector<8x16xf32>
    %21 = arith.addf %18, %20 : vector<8x16xf32>
    %22 = arith.truncf %21 : vector<8x16xf32> to vector<8x16xbf16>
    %c0_17 = arith.constant 0 : index
    %c0_18 = arith.constant 0 : index
    %23 = vector.load %arg8[%c0_17, %c0_18] : memref<8x16xbf16, #tpu.memory_space<vmem>>, vector<8x16xbf16>
    tpu.vector_store %arg8[%c0_17, %c0_18], %22 {strides = array<i32>} : memref<8x16xbf16, #tpu.memory_space<vmem>>, vector<8x16xbf16>,
    return
  }
  func.func @transform_0(%arg0: i32) -> (i32, i32) {
    %c0_i32 = arith.constant 0 : i32
    %c0_i32_0 = arith.constant 0 : i32
    return %arg0, %c0_i32 : i32, i32
  }
  func.func @transform_1(%arg0: i32) -> (i32, i32) {
    %c0_i32 = arith.constant 0 : i32
    %c0_i32_0 = arith.constant 0 : i32
    %c0_i32_1 = arith.constant 0 : i32
    return %c0_i32, %c0_i32_0 : i32, i32
  }
  func.func @transform_2(%arg0: i32) -> (i32, i32) {
    %c0_i32 = arith.constant 0 : i32
    %c0_i32_0 = arith.constant 0 : i32
    %c0_i32_1 = arith.constant 0 : i32
    return %c0_i32, %c0_i32_0 : i32, i32
  }
  func.func @transform_3(%arg0: i32) -> (i32, i32) {
    %c0_i32 = arith.constant 0 : i32
    %c0_i32_0 = arith.constant 0 : i32
    %c0_i32_1 = arith.constant 0 : i32
    return %c0_i32, %c0_i32_0 : i32, i32
  }
  func.func @transform_4(%arg0: i32) -> (i32, i32) {
    %c0_i32 = arith.constant 0 : i32
    %c0_i32_0 = arith.constant 0 : i32
    %c0_i32_1 = arith.constant 0 : i32
    return %c0_i32, %c0_i32_0 : i32, i32
  }
  func.func @transform_5(%arg0: i32) -> (i32, i32) {
    %c0_i32 = arith.constant 0 : i32
    %c0_i32_0 = arith.constant 0 : i32
    %c0_i32_1 = arith.constant 0 : i32
    return %c0_i32, %c0_i32_0 : i32, i32
  }
  func.func @transform_6(%arg0: i32) -> (i32, i32) {
    %c0_i32 = arith.constant 0 : i32
    %c0_i32_0 = arith.constant 0 : i32
    %c0_i32_1 = arith.constant 0 : i32
    return %c0_i32, %c0_i32_0 : i32, i32
  }
  func.func @transform_7(%arg0: i32) -> (i32, i32) {
    %c0_i32 = arith.constant 0 : i32
    %c0_i32_0 = arith.constant 0 : i32
    return %c0_i32, %arg0 : i32, i32
  }
}

</mosaic_0001>

<llo_original>
// kernel: dqn_forward.1
$region0: #{dqn_forward.1}
  #allocation0 [shape = 'u32[]', space=smem, size = 0x4, offset = 0x4, fixed_abs, tag = 'smem constant byte address 0x4 - core index']
  #allocation1 [shape = 'u32[144,128]{1,0:T(1,128)}', space=vmem, size = 0x12000, scoped, tag = 'internal scratch']
  %s0 = inlined_call_operand.vmem [shape: bf16[16,32], index: 0, kind: input, shape index: {}]
  %s1 = inlined_call_operand.vmem [shape: bf16[32,128], index: 1, kind: input, shape index: {}]
  %s2 = inlined_call_operand.vmem [shape: f32[1,128], index: 2, kind: input, shape index: {}]
  %s3 = inlined_call_operand.hbm [shape: bf16[128,128], index: 3, kind: input, shape index: {}]
  %s4 = inlined_call_operand.vmem [shape: f32[1,128], index: 4, kind: input, shape index: {}]
  %s5 = inlined_call_operand.vmem [shape: bf16[8,128], index: 5, kind: input, shape index: {}]
  %s6 = inlined_call_operand.vmem [shape: f32[8,1], index: 6, kind: input, shape index: {}]
  %s7 = inlined_call_operand.vmem [shape: bf16[8,16], index: 7, kind: output, shape index: {}]
  %s8 = sld [smem:[#allocation0]]
  $region42: #{dqn_forward.1} parent=0
    _
  %s10 = ssub.s32 1, %s8
  %s11 = scalar_select 0, %s10, %s8
  $region1: #{dqn_forward.1} parent=0
    #allocation2 [shape = 'u8[32768]{0}', space=vmem, size = 0x8000, scoped, tag = 'input window, operand 3, single buffered']
    #allocation3 [shape = 's32[1]{0}', space=sflag, size = 0x4, scoped, tag = 'scoped memory for dqn_forward.1']
    %12 = vsyncpa [#allocation3], 0
    // Predicated region
    $region2: #{dqn_forward.1} parent=1 // pred_check
      _
    $region3: #{dqn_forward.1} parent=1 // pred_check_branch
      %14 = sbr.rel (0) target = $region5
    $region4: #{dqn_forward.1} parent=1 // pred_region
      _
    $region5: #{dqn_forward.1} parent=1 // pred_fallthru
      _
    // Predicated region
    $region6: #{dqn_forward.1} parent=1 // pred_check
      _
    $region7: #{dqn_forward.1} parent=1 // pred_check_branch
      %16 = sbr.rel (0) target = $region9
    $region8: #{dqn_forward.1} parent=1 // pred_region
      _
    $region9: #{dqn_forward.1} parent=1 // pred_fallthru
      _
    // Predicated region
    $region10: #{dqn_forward.1} parent=1 // pred_check
      _
    $region11: #{dqn_forward.1} parent=1 // pred_check_branch
      %18 = sbr.rel (0) target = $region13
    $region12: #{dqn_forward.1} parent=1 // pred_region
      _
    $region13: #{dqn_forward.1} parent=1 // pred_fallthru
      _
    // Predicated region
    $region14: #{dqn_forward.1} parent=1 // pred_check
      _
    $region15: #{dqn_forward.1} parent=1 // pred_check_branch
      %20 = sbr.rel (0) target = $region17
    $region16: #{dqn_forward.1} parent=1 // pred_region
      %s22 = ssub.s32 1024, 1024
      %23 = vsyncadd [#allocation3], %s22
      %s24 = sshll.u32 [#allocation2], 4
      %s25 = int_to_ptr.vmem [resolvable:$true] %s24
      %30 = dma.hbm_to_vmem [thread:$0]  %s3, 1024, %s25, [#allocation3], 64, 64, 4
    $region17: #{dqn_forward.1} parent=1 // pred_fallthru
      _
    // Predicated region
    $region18: #{dqn_forward.1} parent=1 // pred_check
      _
    $region19: #{dqn_forward.1} parent=1 // pred_check_branch
      %32 = sbr.rel (0) target = $region21
    $region20: #{dqn_forward.1} parent=1 // pred_region
      _
    $region21: #{dqn_forward.1} parent=1 // pred_fallthru
      _
    // Predicated region
    $region22: #{dqn_forward.1} parent=1 // pred_check
      _
    $region23: #{dqn_forward.1} parent=1 // pred_check_branch
      %34 = sbr.rel (0) target = $region25
    $region24: #{dqn_forward.1} parent=1 // pred_region
      _
    $region25: #{dqn_forward.1} parent=1 // pred_fallthru
      _
    // Predicated region
    $region26: #{dqn_forward.1} parent=1 // pred_check
      _
    $region27: #{dqn_forward.1} parent=1 // pred_check_branch
      %36 = sbr.rel (0) target = $region29
    $region28: #{dqn_forward.1} parent=1 // pred_region
      _
    $region29: #{dqn_forward.1} parent=1 // pred_fallthru
      _
    // Predicated region
    $region30: #{dqn_forward.1} parent=1 // pred_check
      _
    $region31: #{dqn_forward.1} parent=1 // pred_check_branch
      %38 = sbr.rel (0) target = $region33
    $region32: #{dqn_forward.1} parent=1 // pred_region
      %39 = dma.done [#allocation3], 1024
    $region33: #{dqn_forward.1} parent=1 // pred_fallthru
      _
    %v41 = vld [vmem:[%s0] sm:$0xf]
    %v42 = vld [vmem:[%s0 + $0x4] sm:$0xf]
    %v43 = vld [vmem:[%s1] sm:$0xf]
    %v44 = vld [vmem:[%s1 + $0x4] sm:$0xf]
    %v45 = vld [vmem:[%s1 + $0x8] sm:$0xf]
    %v46 = vld [vmem:[%s1 + $0xc] sm:$0xf]
    %v47 = vld [vmem:[%s2] sm:$0x1]
    %v49 = vlaneseq
    %v50 = vshrl.u32 %v49, 7
    %v51 = vsub.s32 0, %v50
    %v52 = vrot.slane %v47, %v51
    %v56 = vunpack.c.l.b16 %v41
    %v57 = vunpack.c.l.b16 %v42
    %v58 = vpack.c.b16 %v57, %v56
    %v63 = vunpack.c.l.b16 %v43
    %v64 = vunpack.c.l.b16 %v44
    %v65 = vunpack.c.l.b16 %v45
    %v66 = vunpack.c.l.b16 %v46
    %v67 = vpack.c.b16 %v64, %v63
    %v68 = vpack.c.b16 %v66, %v65
    %vm71 = vcmask 261120
    %v73 = vsel %vm71, %v58, 0
    %75 = vmatprep.subr.bf16.mxu0 0
    %76 = vmatpush1.bf16.msra.mxu0 %v67
    %77 = vmatprep.subr.bf16.mxu0 0
    %78 = vmatpush1.bf16.msra.mxu0 %v68
    %79 = vmatprep.subr.bf16.mxu0 0
    %80 = vmatpush1.bf16.msra.mxu0 0
    %81 = vmatprep.subr.bf16.mxu0 0
    %82 = vmatpush1.bf16.msra.mxu0 0
    %83 = vmatprep.subr.bf16.mxu0 0
    %84 = vmatpush1.bf16.msra.mxu0 0
    %85 = vmatprep.subr.bf16.mxu0 0
    %86 = vmatpush1.bf16.msra.mxu0 0
    %87 = vmatprep.subr.bf16.mxu0 0
    %88 = vmatpush1.bf16.msra.mxu0 0
    %89 = vmatprep.subr.bf16.mxu0 0
    %90 = vmatpush1.bf16.msra.mxu0 0
    %91 = vmatprep.subr.bf16.mxu0 0
    %92 = vmatpush1.bf16.msra.mxu0 0
    %93 = vmatprep.subr.bf16.mxu0 0
    %94 = vmatpush1.bf16.msra.mxu0 0
    %95 = vmatprep.subr.bf16.mxu0 0
    %96 = vmatpush1.bf16.msra.mxu0 0
    %97 = vmatprep.subr.bf16.mxu0 0
    %98 = vmatpush1.bf16.msra.mxu0 0
    %99 = vmatprep.subr.bf16.mxu0 0
    %100 = vmatpush1.bf16.msra.mxu0 0
    %101 = vmatprep.subr.bf16.mxu0 0
    %102 = vmatpush1.bf16.msra.mxu0 0
    %103 = vmatprep.subr.bf16.mxu0 0
    %104 = vmatpush1.bf16.msra.mxu0 0
    %105 = vmatprep.subr.bf16.mxu0 0
    %106 = vmatpush1.bf16.msra.mxu0 0
    %107 = vmatprep.mubr.bf16.mxu0 0
    %108 = vmatmul.mubr.bf16.gmra.mrb[0].mxu0 %v73
    %v109 = vpop.f32.mrb[0].mxu0
    %v110 = vadd.f32 %v52, %v109
    %v111 = vpop.f32.mrb[0].mxu0
    %v112 = vpop.f32.mrb[0].mxu0
    %v113 = vadd.f32 %v52, %v112
    %v114 = vpop.f32.mrb[0].mxu0
    %115 = vdwg.mxu0
    %v116 = vmax.f32 %v110, 0.0
    %v117 = vmax.f32 %v113, 0.0
    %v118 = vpack.c.bf16 %v117, %v116
    %v119 = vld [vmem:[#allocation2] sm:$0xf]
    %v120 = vld [vmem:[#allocation2 + $0x4] sm:$0xf]
    %v121 = vld [vmem:[#allocation2 + $0x8] sm:$0xf]
    %v122 = vld [vmem:[#allocation2 + $0xc] sm:$0xf]
    %v123 = vld [vmem:[#allocation2 + $0x10] sm:$0xf]
    %v124 = vld [vmem:[#allocation2 + $0x14] sm:$0xf]
    %v125 = vld [vmem:[#allocation2 + $0x18] sm:$0xf]
    %v126 = vld [vmem:[#allocation2 + $0x1c] sm:$0xf]
    %v127 = vld [vmem:[#allocation2 + $0x20] sm:$0xf]
    %v128 = vld [vmem:[#allocation2 + $0x24] sm:$0xf]
    %v129 = vld [vmem:[#allocation2 + $0x28] sm:$0xf]
    %v130 = vld [vmem:[#allocation2 + $0x2c] sm:$0xf]
    %v131 = vld [vmem:[#allocation2 + $0x30] sm:$0xf]
    %v132 = vld [vmem:[#allocation2 + $0x34] sm:$0xf]
    %v133 = vld [vmem:[#allocation2 + $0x38] sm:$0xf]
    %v134 = vld [vmem:[#allocation2 + $0x3c] sm:$0xf]
    %v135 = vld [vmem:[%s4] sm:$0x1]
    %v137 = vlaneseq
    %v138 = vshrl.u32 %v137, 7
    %v139 = vsub.s32 0, %v138
    %v140 = vrot.slane %v135, %v139
    %v158 = vunpack.c.l.b16 %v119
    %v159 = vunpack.c.l.b16 %v120
    %v160 = vunpack.c.l.b16 %v121
    %v161 = vunpack.c.l.b16 %v122
    %v162 = vunpack.c.l.b16 %v123
    %v163 = vunpack.c.l.b16 %v124
    %v164 = vunpack.c.l.b16 %v125
    %v165 = vunpack.c.l.b16 %v126
    %v166 = vunpack.c.l.b16 %v127
    %v167 = vunpack.c.l.b16 %v128
    %v168 = vunpack.c.l.b16 %v129
    %v169 = vunpack.c.l.b16 %v130
    %v170 = vunpack.c.l.b16 %v131
    %v171 = vunpack.c.l.b16 %v132
    %v172 = vunpack.c.l.b16 %v133
    %v173 = vunpack.c.l.b16 %v134
    %v174 = vpack.c.b16 %v159, %v158
    %v175 = vpack.c.b16 %v161, %v160
    %v176 = vpack.c.b16 %v163, %v162
    %v177 = vpack.c.b16 %v165, %v164
    %v178 = vpack.c.b16 %v167, %v166
    %v179 = vpack.c.b16 %v169, %v168
    %v180 = vpack.c.b16 %v171, %v170
    %v181 = vpack.c.b16 %v173, %v172
    %190 = vmatprep.subr.bf16.mxu0 0
    %191 = vmatpush1.bf16.msra.mxu0 %v174
    %192 = vmatprep.subr.bf16.mxu0 0
    %193 = vmatpush1.bf16.msra.mxu0 %v175
    %194 = vmatprep.subr.bf16.mxu0 0
    %195 = vmatpush1.bf16.msra.mxu0 %v176
    %196 = vmatprep.subr.bf16.mxu0 0
    %197 = vmatpush1.bf16.msra.mxu0 %v177
    %198 = vmatprep.subr.bf16.mxu0 0
    %199 = vmatpush1.bf16.msra.mxu0 %v178
    %200 = vmatprep.subr.bf16.mxu0 0
    %201 = vmatpush1.bf16.msra.mxu0 %v179
    %202 = vmatprep.subr.bf16.mxu0 0
    %203 = vmatpush1.bf16.msra.mxu0 %v180
    %204 = vmatprep.subr.bf16.mxu0 0
    %205 = vmatpush1.bf16.msra.mxu0 %v181
    %206 = vmatprep.subr.bf16.mxu0 0
    %207 = vmatpush1.bf16.msra.mxu0 0
    %208 = vmatprep.subr.bf16.mxu0 0
    %209 = vmatpush1.bf16.msra.mxu0 0
    %210 = vmatprep.subr.bf16.mxu0 0
    %211 = vmatpush1.bf16.msra.mxu0 0
    %212 = vmatprep.subr.bf16.mxu0 0
    %213 = vmatpush1.bf16.msra.mxu0 0
    %214 = vmatprep.subr.bf16.mxu0 0
    %215 = vmatpush1.bf16.msra.mxu0 0
    %216 = vmatprep.subr.bf16.mxu0 0
    %217 = vmatpush1.bf16.msra.mxu0 0
    %218 = vmatprep.subr.bf16.mxu0 0
    %219 = vmatpush1.bf16.msra.mxu0 0
    %220 = vmatprep.subr.bf16.mxu0 0
    %221 = vmatpush1.bf16.msra.mxu0 0
    %222 = vmatprep.mubr.bf16.mxu0 0
    %223 = vmatmul.mubr.bf16.gmra.mrb[0].mxu0 %v118
    %v224 = vpop.f32.mrb[0].mxu0
    %v225 = vadd.f32 %v140, %v224
    %v226 = vpop.f32.mrb[0].mxu0
    %v227 = vpop.f32.mrb[0].mxu0
    %v228 = vadd.f32 %v140, %v227
    %v229 = vpop.f32.mrb[0].mxu0
    %230 = vdwg.mxu0
    %v231 = vmax.f32 %v225, 0.0
    %v232 = vmax.f32 %v228, 0.0
    %v233 = vld [vmem:[%s5] sm:$0xf]
    %v234 = vpack.c.bf16 %v232, %v231
    %v235 = vld [vmem:[%s6] sm:$0xff]
    %237 = vset.pattern.permute.xlu0 0
    %238 = vperm.xlu0 %237, %v235
    %v239 = vpop.permute.xlu0 %238
    %241 = vmatprep.subr.bf16.mxu0 0
    %242 = vmatpush1.bf16.xpose.msra.mxu0 %v234
    %243 = vmatprep.subr.bf16.mxu0 0
    %244 = vmatpush1.bf16.xpose.msra.mxu0 0
    %245 = vmatprep.subr.bf16.mxu0 0
    %246 = vmatpush1.bf16.xpose.msra.mxu0 0
    %247 = vmatprep.subr.bf16.mxu0 0
    %248 = vmatpush1.bf16.xpose.msra.mxu0 0
    %249 = vmatprep.subr.bf16.mxu0 0
    %250 = vmatpush1.bf16.xpose.msra.mxu0 0
    %251 = vmatprep.subr.bf16.mxu0 0
    %252 = vmatpush1.bf16.xpose.msra.mxu0 0
    %253 = vmatprep.subr.bf16.mxu0 0
    %254 = vmatpush1.bf16.xpose.msra.mxu0 0
    %255 = vmatprep.subr.bf16.mxu0 0
    %256 = vmatpush1.bf16.xpose.msra.mxu0 0
    %257 = vmatprep.subr.bf16.mxu0 0
    %258 = vmatpush1.bf16.xpose.msra.mxu0 0
    %259 = vmatprep.subr.bf16.mxu0 0
    %260 = vmatpush1.bf16.xpose.msra.mxu0 0
    %261 = vmatprep.subr.bf16.mxu0 0
    %262 = vmatpush1.bf16.xpose.msra.mxu0 0
    %263 = vmatprep.subr.bf16.mxu0 0
    %264 = vmatpush1.bf16.xpose.msra.mxu0 0
    %265 = vmatprep.subr.bf16.mxu0 0
    %266 = vmatpush1.bf16.xpose.msra.mxu0 0
    %267 = vmatprep.subr.bf16.mxu0 0
    %268 = vmatpush1.bf16.xpose.msra.mxu0 0
    %269 = vmatprep.subr.bf16.mxu0 0
    %270 = vmatpush1.bf16.xpose.msra.mxu0 0
    %271 = vmatprep.subr.bf16.mxu0 0
    %272 = vmatpush1.bf16.xpose.msra.mxu0 0
    %273 = vmatprep.mubr.bf16.mxu0 0
    %274 = vmatmul.mubr.bf16.gmra.mrb[0].mxu0 %v233
    %v275 = vpop.f32.mrb[0].mxu0
    %v276 = vadd.f32 %v239, %v275
    %v277 = vpop.f32.mrb[0].mxu0
    %v278 = vpop.f32.mrb[0].mxu0
    %v279 = vpop.f32.mrb[0].mxu0
    %280 = vdwg.mxu0
    %v281 = vpack.c.bf16 %v276, %v276
    %vm282 = vcmask 125952
    %283 = vst.msk [vmem:[%s7] sm:$0xf] %vm282, %v281
    // Predicated region
    $region34: #{dqn_forward.1} parent=1 // pred_check
      _
    $region35: #{dqn_forward.1} parent=1 // pred_check_branch
      %285 = sbr.rel (0) target = $region37
    $region36: #{dqn_forward.1} parent=1 // pred_region
      _
    $region37: #{dqn_forward.1} parent=1 // pred_fallthru
      _
    // Predicated region
    $region38: #{dqn_forward.1} parent=1 // pred_check
      _
    $region39: #{dqn_forward.1} parent=1 // pred_check_branch
      %287 = sbr.rel (0) target = $region41
    $region40: #{dqn_forward.1} parent=1 // pred_region
      _
    $region41: #{dqn_forward.1} parent=1 // pred_fallthru
      _
    %288 = vsyncpa [#allocation3], 1

</llo_original>
